<compile_context>
chip_gen: v5e
topology: v5e:2x2
jax: 0.10.0
libtpu: 0.0.40
codegen_flags: <defaults>
</compile_context>

<pallas_src>
import jax
import jax.numpy as jnp
from jax.experimental import pallas as pl
from jax.experimental.pallas import tpu as pltpu


# ---------------------------------------------------------------------------
# Hardware-aware sizing helpers
# ---------------------------------------------------------------------------
def _tpu_vmem_and_tensorcores():
    """(physical VMEM bytes, TensorCores sharing the grid), with safe fallbacks."""
    kind = ""
    try:
        kind = jax.devices()[0].device_kind.lower()
    except Exception:
        pass
    vmem = None
    try:
        vmem = int(pltpu.get_tpu_info().vmem_capacity_bytes)
    except Exception:
        pass
    if vmem is None:
        # v7x: 64 MiB per TensorCore; v5e/v6e: 128 MiB.
        vmem = (64 << 20) if "v7" in kind else (128 << 20)
    multi_tc = ("v7" in kind) or ("v4" in kind) or ("v5p" in kind)
    return vmem, (2 if multi_tc else 1)


def _pick_batch_tile(N, per_batch_bytes, block_budget_bytes, num_tensorcores):
    """Largest divisor of N whose (TB, C, HW) block fits the per-block budget.
    Only on multi-TC chips do we also prefer keeping >= num_tensorcores grid
    steps so both cores get work; single-TC chips just take the biggest tile."""
    divisors = [d for d in range(1, N + 1) if N % d == 0]
    fitting = [d for d in divisors if d * per_batch_bytes <= block_budget_bytes]
    if not fitting:
        return 1  # unreachable: split path is taken when even TB=1 doesn't fit
    if num_tensorcores > 1:
        multi = [d for d in fitting if (N // d) >= num_tensorcores]
        if multi:
            return max(multi)
    return max(fitting)


def _pick_hw_tile(C, HW, itemsize, block_budget_bytes):
    """Lane tile for the split path: a multiple of 128 fitting the budget,
    preferring one that divides HW exactly (no tail masking)."""
    per_lane_col = C * itemsize
    max_thw = max(128, (block_budget_bytes // per_lane_col) // 128 * 128)
    if max_thw >= HW:
        return HW
    exact = [t for t in range(128, max_thw + 1, 128) if HW % t == 0]
    if exact:
        return max(exact)
    return max_thw  # cdiv grid; pass-1 kernel masks the tail lanes


# ---------------------------------------------------------------------------
# Kernels
# ---------------------------------------------------------------------------
def _fused_kernel(x_ref, w1_ref, b1_ref, w2_ref, b2_ref, o_ref):
    # x_ref: (TB, C, HW)  w1: (C, P) f32  b1: (1, P) f32  w2: (P, C)  b2: (1, C)
    x = x_ref[...]                                   # keep in input dtype
    hw = x.shape[-1]

    # Global average / max pooling over the spatial (lane) axis; f32 only on
    # the reduced (TB, C) descriptors.
    avg = jnp.sum(x, axis=-1, dtype=jnp.float32) * (1.0 / hw)   # (TB, C)
    mx = jnp.max(x, axis=-1).astype(jnp.float32)                # (TB, C)

    # Shared MLP applied to both descriptors in ONE dot->ReLU->dot chain.
    tb = avg.shape[0]
    v = jnp.concatenate([avg, mx], axis=0)                       # (2*TB, C)
    h = jnp.dot(v, w1_ref[...], preferred_element_type=jnp.float32) + b1_ref[...]
    h = jnp.maximum(h, 0.0)
    y = jnp.dot(h, w2_ref[...], preferred_element_type=jnp.float32) + b2_ref[...]
    desc = jax.nn.sigmoid(y[:tb] + y[tb:])                       # (TB, C)

    # Broadcast multiply in the input dtype (mem/store bound; bf16 vregs denser).
    o_ref[...] = (x * desc.astype(x.dtype)[:, :, None]).astype(o_ref.dtype)


def _make_reduce_kernel(hw_total, thw):
    """Split-path pass 1: accumulate sum/max over HW tiles, finalize MLP+sigmoid."""
    masked_tail = (hw_total % thw) != 0

    def reduce_kernel(x_ref, w1_ref, b1_ref, w2_ref, b2_ref, desc_ref,
                      sum_sc, max_sc):
        k = pl.program_id(1)

        @pl.when(k == 0)
        def _():
            sum_sc[...] = jnp.zeros_like(sum_sc)
            max_sc[...] = jnp.full_like(max_sc, -jnp.inf)

        x = x_ref[...]                               # (1, C, THW)
        if masked_tail:
            lane = jax.lax.broadcasted_iota(jnp.int32, x.shape, 2)
            valid = (k * thw + lane) < hw_total
            x_sum = jnp.where(valid, x, jnp.zeros_like(x))
            x_max = jnp.where(valid, x, jnp.full_like(x, -jnp.inf))
        else:
            x_sum = x
            x_max = x

        sum_sc[...] += jnp.sum(x_sum, axis=-1, dtype=jnp.float32)            # (1, C)
        max_sc[...] = jnp.maximum(max_sc[...],
                                  jnp.max(x_max, axis=-1).astype(jnp.float32))

        @pl.when(k == pl.num_programs(1) - 1)
        def _():
            avg = sum_sc[...] * (1.0 / hw_total)                              # (1, C)
            mx = max_sc[...]                                                  # (1, C)
            v = jnp.concatenate([avg, mx], axis=0)                            # (2, C)
            h = jnp.dot(v, w1_ref[...], preferred_element_type=jnp.float32) + b1_ref[...]
            h = jnp.maximum(h, 0.0)
            y = jnp.dot(h, w2_ref[...], preferred_element_type=jnp.float32) + b2_ref[...]
            d = jax.nn.sigmoid(y[0:1] + y[1:2])                               # (1, C)
            desc_ref[...] = d[:, :, None].astype(desc_ref.dtype)              # (1, C, 1)

    return reduce_kernel


def _scale_kernel(x_ref, desc_ref, o_ref):
    # Split-path pass 2: stream x again and scale by the per-channel descriptor.
    x = x_ref[...]                                   # (1, C, THW)
    d = desc_ref[...]                                # (1, C, 1) f32
    o_ref[...] = (x * d.astype(x.dtype)).astype(o_ref.dtype)


# ---------------------------------------------------------------------------
# Wrapper
# ---------------------------------------------------------------------------
def channel_attention(x, w1, b1, w2, b2, *, force_split=False, force_hw_tile=None):
    """x: (N, C, H, W) NCHW like the PyTorch module. w1: (C, P), b1: (P,),
    w2: (P, C), b2: (C,). Returns x * sigmoid(MLP(avg) + MLP(max))."""
    N, C, H, W = x.shape
    HW = H * W
    P = w1.shape[1]
    itemsize = jnp.dtype(x.dtype).itemsize

    # Hoist the grid-invariant f32 casts of the MLP parameters out of the kernel.
    w1_f = w1.astype(jnp.float32)
    b1_f = b1.reshape(1, P).astype(jnp.float32)
    w2_f = w2.astype(jnp.float32)
    b2_f = b2.reshape(1, C).astype(jnp.float32)
    param_bytes = 4 * (w1_f.size + b1_f.size + w2_f.size + b2_f.size)

    physical_vmem, num_tc = _tpu_vmem_and_tensorcores()
    cap = int(0.85 * physical_vmem)           # honest per-generation VMEM cap
    overhead = 2 * param_bytes + (2 << 20)    # double-buffered params + headroom
    block_budget = max(1 << 20, (cap - overhead) // 4)   # 2x in + 2x out buffers

    x_flat = x.reshape(N, C, HW)
    per_batch_bytes = C * HW * itemsize

    # TODO(synk): when HW is small and not lane-friendly (49/196/...) but C is a
    # multiple of 128, a channels-last (N, HW, C) variant would keep the output
    # stores lane-dense; not done here because the surrounding layout is NCHW
    # and the wrapper transpose would cost an extra full HBM pass.

    if per_batch_bytes <= block_budget and not force_split:
        # ------------------------- fused single-pass path -------------------
        TB = _pick_batch_tile(N, per_batch_bytes, block_budget, num_tc)
        grid = (N // TB,)
        block_bytes = TB * per_batch_bytes
        needed = 4 * block_bytes + 2 * param_bytes + (2 << 20)
        vmem_limit = int(min(max(needed, 32 << 20), cap))

        cost = pl.CostEstimate(
            flops=3 * N * C * HW + 8 * N * C * P,   # sum + max + scale, tiny MLP
            transcendentals=N * C,                  # sigmoid
            bytes_accessed=2 * N * C * HW * itemsize + param_bytes,
        )

        out_flat = pl.pallas_call(
            _fused_kernel,
            out_shape=jax.ShapeDtypeStruct((N, C, HW), x.dtype),
            grid_spec=pltpu.PrefetchScalarGridSpec(
                num_scalar_prefetch=0,
                grid=grid,
                in_specs=[
                    pl.BlockSpec((TB, C, HW), lambda b: (b, 0, 0)),
                    pl.BlockSpec((C, P), lambda b: (0, 0)),
                    pl.BlockSpec((1, P), lambda b: (0, 0)),
                    pl.BlockSpec((P, C), lambda b: (0, 0)),
                    pl.BlockSpec((1, C), lambda b: (0, 0)),
                ],
                out_specs=pl.BlockSpec((TB, C, HW), lambda b: (b, 0, 0)),
            ),
            compiler_params=pltpu.CompilerParams(
                dimension_semantics=("parallel",),
                vmem_limit_bytes=vmem_limit,
            ),
            cost_estimate=cost,
        )(x_flat, w1_f, b1_f, w2_f, b2_f)
        return out_flat.reshape(N, C, H, W)

    # --------------- split reduce-then-scale path (large C*HW planes) -------
    THW = force_hw_tile if force_hw_tile is not None else _pick_hw_tile(
        C, HW, itemsize, block_budget)
    n_hw = -(-HW // THW)
    hw_block_bytes = C * THW * itemsize

    # Pass 1: pooled sum/max over HW tiles, MLP + sigmoid at the last tile.
    needed1 = 2 * hw_block_bytes + 2 * param_bytes + 2 * C * 4 + (2 << 20)
    vmem1 = int(min(max(needed1, 32 << 20), cap))
    cost1 = pl.CostEstimate(
        flops=2 * N * C * HW + 8 * N * C * P,
        transcendentals=N * C,
        bytes_accessed=N * C * HW * itemsize + param_bytes + N * C * 4,
    )
    desc = pl.pallas_call(
        _make_reduce_kernel(HW, THW),
        out_shape=jax.ShapeDtypeStruct((N, C, 1), jnp.float32),
        grid_spec=pltpu.PrefetchScalarGridSpec(
            num_scalar_prefetch=0,
            grid=(N, n_hw),
            in_specs=[
                pl.BlockSpec((1, C, THW), lambda b, k: (b, 0, k)),
                pl.BlockSpec((C, P), lambda b, k: (0, 0)),
                pl.BlockSpec((1, P), lambda b, k: (0, 0)),
                pl.BlockSpec((P, C), lambda b, k: (0, 0)),
                pl.BlockSpec((1, C), lambda b, k: (0, 0)),
            ],
            out_specs=pl.BlockSpec((1, C, 1), lambda b, k: (b, 0, 0)),
            scratch_shapes=[pltpu.VMEM((1, C), jnp.float32),
                            pltpu.VMEM((1, C), jnp.float32)],
        ),
        compiler_params=pltpu.CompilerParams(
            dimension_semantics=("parallel", "arbitrary"),
            vmem_limit_bytes=vmem1,
        ),
        cost_estimate=cost1,
    )(x_flat, w1_f, b1_f, w2_f, b2_f)

    # Pass 2: stream x again and scale by desc.
    needed2 = 4 * hw_block_bytes + 2 * C * 4 + (2 << 20)
    vmem2 = int(min(max(needed2, 32 << 20), cap))
    cost2 = pl.CostEstimate(
        flops=N * C * HW,
        transcendentals=0,
        bytes_accessed=2 * N * C * HW * itemsize + N * C * 4,
    )
    out_flat = pl.pallas_call(
        _scale_kernel,
        out_shape=jax.ShapeDtypeStruct((N, C, HW), x.dtype),
        grid_spec=pltpu.PrefetchScalarGridSpec(
            num_scalar_prefetch=0,
            grid=(N, n_hw),
            in_specs=[
                pl.BlockSpec((1, C, THW), lambda b, k: (b, 0, k)),
                pl.BlockSpec((1, C, 1), lambda b, k: (b, 0, 0)),
            ],
            out_specs=pl.BlockSpec((1, C, THW), lambda b, k: (b, 0, k)),
        ),
        compiler_params=pltpu.CompilerParams(
            dimension_semantics=("parallel", "parallel"),
            vmem_limit_bytes=vmem2,
        ),
        cost_estimate=cost2,
    )(x_flat, desc)
    return out_flat.reshape(N, C, H, W)


# ---------------------------------------------------------------------------
# Pure-JAX reference mirroring the PyTorch forward
# ---------------------------------------------------------------------------
def reference_channel_attention(x, w1, b1, w2, b2):
    xf = x.astype(jnp.float32)
    avg = jnp.mean(xf, axis=(2, 3))   # (N, C)
    mx = jnp.max(xf, axis=(2, 3))     # (N, C)

    def mlp(v):
        h = jnp.maximum(v @ w1 + b1, 0.0)
        return h @ w2 + b2

    desc = jax.nn.sigmoid(mlp(avg) + mlp(mx))  # (N, C)
    return (xf * desc[:, :, None, None]).astype(x.dtype)


if __name__ == "__main__":
    key = jax.random.PRNGKey(0)
    (kx, k1, k2, k3, k4, kx2, k5, k6, k7, k8) = jax.random.split(key, 10)

    # --- Test 1: fused single-pass path (small shapes consistent w/ module) ---
    N, C, H, W, planes = 2, 4, 16, 16, 8
    x = jax.random.normal(kx, (N, C, H, W), dtype=jnp.float32)
    w1 = jax.random.normal(k1, (C, planes), dtype=jnp.float32) * 0.1
    b1 = jax.random.normal(k2, (planes,), dtype=jnp.float32) * 0.1
    w2 = jax.random.normal(k3, (planes, C), dtype=jnp.float32) * 0.1
    b2 = jax.random.normal(k4, (C,), dtype=jnp.float32) * 0.1

    out = jax.block_until_ready(channel_attention(x, w1, b1, w2, b2))
    ref = reference_channel_attention(x, w1, b1, w2, b2)
    assert out.shape == (N, C, H, W)
    assert jnp.allclose(out, ref, atol=1e-5, rtol=1e-5), "fused path mismatch"

    # --- Test 2: split reduce-then-scale path (forced, small shapes) ---------
    N2, C2, H2, W2, planes2 = 2, 8, 16, 16, 8
    x2 = jax.random.normal(kx2, (N2, C2, H2, W2), dtype=jnp.float32)
    w1b = jax.random.normal(k5, (C2, planes2), dtype=jnp.float32) * 0.1
    b1b = jax.random.normal(k6, (planes2,), dtype=jnp.float32) * 0.1
    w2b = jax.random.normal(k7, (planes2, C2), dtype=jnp.float32) * 0.1
    b2b = jax.random.normal(k8, (C2,), dtype=jnp.float32) * 0.1

    out2 = jax.block_until_ready(
        channel_attention(x2, w1b, b1b, w2b, b2b,
                          force_split=True, force_hw_tile=128))
    ref2 = reference_channel_attention(x2, w1b, b1b, w2b, b2b)
    assert out2.shape == (N2, C2, H2, W2)
    assert jnp.allclose(out2, ref2, atol=1e-5, rtol=1e-5), "split path mismatch"

    print("KERNEL_OK")
</pallas_src>

<mosaic_0001>
module attributes {stable_mosaic.version = 11 : i64} {
  func.func @_fused_kernel(%arg0: i32, %arg1: memref<2x4x256xf32, #tpu.memory_space<vmem>>, %arg2: memref<4x8xf32, #tpu.memory_space<vmem>>, %arg3: memref<1x8xf32, #tpu.memory_space<vmem>>, %arg4: memref<8x4xf32, #tpu.memory_space<vmem>>, %arg5: memref<1x4xf32, #tpu.memory_space<vmem>>, %arg6: memref<2x4x256xf32, #tpu.memory_space<vmem>>) attributes {dimension_semantics = [#tpu.dimension_semantics<parallel>], iteration_bounds = array<i64: 1>, scalar_prefetch = 0 : i64, scratch_operands = 0 : i64, tpu.core_type = #tpu.core_type<tc>, window_params = [{transform_indices = @transform_0, window_bounds = array<i64: 2, 4, 256>}, {pipeline_mode = #tpu.pipeline_mode<synchronous>, transform_indices = @transform_1, window_bounds = array<i64: 4, 8>}, {pipeline_mode = #tpu.pipeline_mode<synchronous>, transform_indices = @transform_2, window_bounds = array<i64: 1, 8>}, {pipeline_mode = #tpu.pipeline_mode<synchronous>, transform_indices = @transform_3, window_bounds = array<i64: 8, 4>}, {pipeline_mode = #tpu.pipeline_mode<synchronous>, transform_indices = @transform_4, window_bounds = array<i64: 1, 4>}, {transform_indices = @transform_5, window_bounds = array<i64: 2, 4, 256>}]} {
    %c0 = arith.constant 0 : index
    %c0_0 = arith.constant 0 : index
    %c0_1 = arith.constant 0 : index
    %0 = vector.load %arg1[%c0, %c0_0, %c0_1] : memref<2x4x256xf32, #tpu.memory_space<vmem>>, vector<2x4x256xf32>
    %cst = arith.constant dense<0.000000e+00> : vector<2x4xf32>
    %1 = vector.multi_reduction <add>, %0, %cst [2] : vector<2x4x256xf32> to vector<2x4xf32>
    %cst_2 = arith.constant 3.906250e-03 : f32
    %2 = vector.broadcast %cst_2 : f32 to vector<2x4xf32>
    %3 = arith.mulf %1, %2 : vector<2x4xf32>
    %cst_3 = arith.constant dense<0xFF800000> : vector<2x4xf32>
    %4 = vector.multi_reduction <maximumf>, %0, %cst_3 [2] : vector<2x4x256xf32> to vector<2x4xf32>
    %5 = tpu.concatenate %3, %4 in 0 : vector<2x4xf32>, vector<2x4xf32> -> vector<4x4xf32>
    %c0_4 = arith.constant 0 : index
    %c0_5 = arith.constant 0 : index
    %6 = vector.load %arg2[%c0_4, %c0_5] : memref<4x8xf32, #tpu.memory_space<vmem>>, vector<4x8xf32>
    %cst_6 = arith.constant dense<0.000000e+00> : vector<4x8xf32>
    %7 = tpu.matmul %5, %6, %cst_6 {dimension_numbers = #tpu.dot_dimension_numbers<[1], [0], [0], [1], [0, 0, 1, 1], [], []>} : vector<4x4xf32>, vector<4x8xf32>, vector<4x8xf32> -> vector<4x8xf32>
    %c0_7 = arith.constant 0 : index
    %c0_8 = arith.constant 0 : index
    %8 = vector.load %arg3[%c0_7, %c0_8] : memref<1x8xf32, #tpu.memory_space<vmem>>, vector<1x8xf32>
    %9 = vector.broadcast %8 : vector<1x8xf32> to vector<4x8xf32>
    %10 = arith.addf %7, %9 : vector<4x8xf32>
    %cst_9 = arith.constant 0.000000e+00 : f32
    %11 = vector.broadcast %cst_9 : f32 to vector<4x8xf32>
    %12 = arith.maximumf %10, %11 : vector<4x8xf32>
    %c0_10 = arith.constant 0 : index
    %c0_11 = arith.constant 0 : index
    %13 = vector.load %arg4[%c0_10, %c0_11] : memref<8x4xf32, #tpu.memory_space<vmem>>, vector<8x4xf32>
    %cst_12 = arith.constant dense<0.000000e+00> : vector<4x4xf32>
    %14 = tpu.matmul %12, %13, %cst_12 {dimension_numbers = #tpu.dot_dimension_numbers<[1], [0], [0], [1], [0, 0, 1, 1], [], []>} : vector<4x8xf32>, vector<8x4xf32>, vector<4x4xf32> -> vector<4x4xf32>
    %c0_13 = arith.constant 0 : index
    %c0_14 = arith.constant 0 : index
    %15 = vector.load %arg5[%c0_13, %c0_14] : memref<1x4xf32, #tpu.memory_space<vmem>>, vector<1x4xf32>
    %16 = vector.broadcast %15 : vector<1x4xf32> to vector<4x4xf32>
    %17 = arith.addf %14, %16 : vector<4x4xf32>
    %18 = vector.extract_strided_slice %17 {offsets = [0, 0], sizes = [2, 4], strides = [1, 1]} : vector<4x4xf32> to vector<2x4xf32>
    %19 = vector.extract_strided_slice %17 {offsets = [2, 0], sizes = [2, 4], strides = [1, 1]} : vector<4x4xf32> to vector<2x4xf32>
    %20 = arith.addf %18, %19 : vector<2x4xf32>
    %21 = arith.negf %20 : vector<2x4xf32>
    %22 = math.exp %21 : vector<2x4xf32>
    %cst_15 = arith.constant 1.000000e+00 : f32
    %23 = vector.broadcast %cst_15 : f32 to vector<2x4xf32>
    %24 = arith.addf %23, %22 : vector<2x4xf32>
    %25 = arith.divf %23, %24 : vector<2x4xf32>
    %26 = vector.shape_cast %25 : vector<2x4xf32> to vector<2x4x1xf32>
    %27 = vector.broadcast %26 : vector<2x4x1xf32> to vector<2x4x256xf32>
    %28 = arith.mulf %0, %27 : vector<2x4x256xf32>
    %c0_16 = arith.constant 0 : index
    %c0_17 = arith.constant 0 : index
    %c0_18 = arith.constant 0 : index
    %29 = vector.load %arg6[%c0_16, %c0_17, %c0_18] : memref<2x4x256xf32, #tpu.memory_space<vmem>>, vector<2x4x256xf32>
    tpu.vector_store %arg6[%c0_16, %c0_17, %c0_18], %28 {strides = array<i32>} : memref<2x4x256xf32, #tpu.memory_space<vmem>>, vector<2x4x256xf32>,
    return
  }
  func.func @transform_0(%arg0: i32) -> (i32, i32, i32) {
    %c0_i32 = arith.constant 0 : i32
    %c0_i32_0 = arith.constant 0 : i32
    %c0_i32_1 = arith.constant 0 : i32
    return %arg0, %c0_i32, %c0_i32_0 : i32, i32, i32
  }
  func.func @transform_1(%arg0: i32) -> (i32, i32) {
    %c0_i32 = arith.constant 0 : i32
    %c0_i32_0 = arith.constant 0 : i32
    %c0_i32_1 = arith.constant 0 : i32
    return %c0_i32, %c0_i32_0 : i32, i32
  }
  func.func @transform_2(%arg0: i32) -> (i32, i32) {
    %c0_i32 = arith.constant 0 : i32
    %c0_i32_0 = arith.constant 0 : i32
    %c0_i32_1 = arith.constant 0 : i32
    return %c0_i32, %c0_i32_0 : i32, i32
  }
  func.func @transform_3(%arg0: i32) -> (i32, i32) {
    %c0_i32 = arith.constant 0 : i32
    %c0_i32_0 = arith.constant 0 : i32
    %c0_i32_1 = arith.constant 0 : i32
    return %c0_i32, %c0_i32_0 : i32, i32
  }
  func.func @transform_4(%arg0: i32) -> (i32, i32) {
    %c0_i32 = arith.constant 0 : i32
    %c0_i32_0 = arith.constant 0 : i32
    %c0_i32_1 = arith.constant 0 : i32
    return %c0_i32, %c0_i32_0 : i32, i32
  }
  func.func @transform_5(%arg0: i32) -> (i32, i32, i32) {
    %c0_i32 = arith.constant 0 : i32
    %c0_i32_0 = arith.constant 0 : i32
    %c0_i32_1 = arith.constant 0 : i32
    return %arg0, %c0_i32, %c0_i32_0 : i32, i32, i32
  }
}

</mosaic_0001>

<llo_original>
// kernel: tpu_custom_call.1
$region0: #{tpu_custom_call.1}
  #allocation0 [shape = 'u32[]', space=smem, size = 0x4, offset = 0x4, fixed_abs, tag = 'smem constant byte address 0x4 - core index']
  #allocation1 [shape = 'u32[72,128]{1,0:T(1,128)}', space=vmem, size = 0x9000, scoped, tag = 'internal scratch']
  %s0 = inlined_call_operand.hbm [shape: f32[2,4,256], index: 0, kind: input, shape index: {}]
  %s1 = inlined_call_operand.vmem [shape: f32[4,8], index: 1, kind: input, shape index: {}]
  %s2 = inlined_call_operand.vmem [shape: f32[1,8], index: 2, kind: input, shape index: {}]
  %s3 = inlined_call_operand.vmem [shape: f32[8,4], index: 3, kind: input, shape index: {}]
  %s4 = inlined_call_operand.vmem [shape: f32[1,4], index: 4, kind: input, shape index: {}]
  %s5 = inlined_call_operand.hbm [shape: f32[2,4,256], index: 5, kind: output, shape index: {}]
  %s6 = sld [smem:[#allocation0]]
  $region34: #{tpu_custom_call.1} parent=0
    _
  %s8 = ssub.s32 1, %s6
  %s9 = scalar_select 0, %s8, %s6
  $region1: #{tpu_custom_call.1} parent=0
    #allocation2 [shape = 'u8[8192]{0}', space=vmem, size = 0x2000, scoped, tag = 'input window, operand 0, single buffered']
    #allocation3 [shape = 's32[1]{0}', space=sflag, size = 0x4, scoped, tag = 'scoped memory for tpu_custom_call.1']
    #allocation4 [shape = 's32[1]{0}', space=sflag, size = 0x4, scoped, tag = 'scoped memory for tpu_custom_call.1']
    #allocation5 [shape = 'u8[8192]{0}', space=vmem, size = 0x2000, scoped, tag = 'output window, operand 0, single buffered']
    %10 = vsyncpa [#allocation3], 0
    %11 = vsyncpa [#allocation4], 0
    // Predicated region
    $region2: #{tpu_custom_call.1} parent=1 // pred_check
      _
    $region3: #{tpu_custom_call.1} parent=1 // pred_check_branch
      %13 = sbr.rel (0) target = $region5
    $region4: #{tpu_custom_call.1} parent=1 // pred_region
      %15 = vsyncadd [#allocation3], 0
      %s16 = sshll.u32 %s0, 4
      %s17 = int_to_ptr.hbm [resolvable:$true] %s16
      %s18 = sshll.u32 [#allocation2], 4
      %s19 = int_to_ptr.vmem [resolvable:$true] %s18
      %24 = dma.hbm_to_vmem [thread:$0]  %s17, 256, %s19, [#allocation3], 128, 128, 8
    $region5: #{tpu_custom_call.1} parent=1 // pred_fallthru
      _
    // Predicated region
    $region6: #{tpu_custom_call.1} parent=1 // pred_check
      _
    $region7: #{tpu_custom_call.1} parent=1 // pred_check_branch
      %26 = sbr.rel (0) target = $region9
    $region8: #{tpu_custom_call.1} parent=1 // pred_region
      _
    $region9: #{tpu_custom_call.1} parent=1 // pred_fallthru
      _
    // Predicated region
    $region10: #{tpu_custom_call.1} parent=1 // pred_check
      _
    $region11: #{tpu_custom_call.1} parent=1 // pred_check_branch
      %28 = sbr.rel (0) target = $region13
    $region12: #{tpu_custom_call.1} parent=1 // pred_region
      _
    $region13: #{tpu_custom_call.1} parent=1 // pred_fallthru
      _
    // Predicated region
    $region14: #{tpu_custom_call.1} parent=1 // pred_check
      _
    $region15: #{tpu_custom_call.1} parent=1 // pred_check_branch
      %30 = sbr.rel (0) target = $region17
    $region16: #{tpu_custom_call.1} parent=1 // pred_region
      _
    $region17: #{tpu_custom_call.1} parent=1 // pred_fallthru
      _
    // Predicated region
    $region18: #{tpu_custom_call.1} parent=1 // pred_check
      _
    $region19: #{tpu_custom_call.1} parent=1 // pred_check_branch
      %32 = sbr.rel (0) target = $region21
    $region20: #{tpu_custom_call.1} parent=1 // pred_region
      _
    $region21: #{tpu_custom_call.1} parent=1 // pred_fallthru
      _
    // Predicated region
    $region22: #{tpu_custom_call.1} parent=1 // pred_check
      _
    $region23: #{tpu_custom_call.1} parent=1 // pred_check_branch
      %34 = sbr.rel (0) target = $region25
    $region24: #{tpu_custom_call.1} parent=1 // pred_region
      %36 = dma.done [#allocation3], 256
    $region25: #{tpu_custom_call.1} parent=1 // pred_fallthru
      _
    %v37 = vld [vmem:[#allocation2] sm:$0xff]
    %v38 = vld [vmem:[#allocation2 + $0x8] sm:$0xff]
    %41 = vst [vmem:[#allocation1] ss:$2 sm:$0xff] %v37
    %v42 = vld.sshfl [vmem:[#allocation1] sm:$0xff pattern:$0x75316420]
    %v43 = vld.sshfl [vmem:[#allocation1 + $0x8] sm:$0xff pattern:$0x75316420]
    %s44 = scalar_lea.vmem [#allocation1], 16
    %45 = vst [vmem:[%s44] ss:$2 sm:$0xff] %v38
    %v46 = vld.sshfl [vmem:[#allocation1 + $0x10] sm:$0xff pattern:$0x75316420]
    %v47 = vld.sshfl [vmem:[#allocation1 + $0x18] sm:$0xff pattern:$0x75316420]
    %vm52 = vcmask 1043456
    %v53 = vsel %vm52, %v42, 0.0
    %v54 = vsel %vm52, %v43, 0.0
    %v55 = vadd.f32 %v53, %v54
    %56 = vadd.xlane.f32.xlu0 %v55
    %v57 = vpop.xlane.xlu0 %56
    %v58 = vsel %vm52, %v46, 0.0
    %v59 = vsel %vm52, %v47, 0.0
    %v60 = vadd.f32 %v58, %v59
    %61 = vadd.xlane.f32.xlu0 %v60
    %v62 = vpop.xlane.xlu0 %61
    %v63 = vmul.f32 %v57, 0.00390625
    %v64 = vmul.f32 %v62, 0.00390625
    %65 = vst [vmem:[#allocation1] ss:$2 sm:$0xff] %v37
    %v66 = vld.sshfl [vmem:[#allocation1] sm:$0xff pattern:$0x75316420]
    %v67 = vld.sshfl [vmem:[#allocation1 + $0x8] sm:$0xff pattern:$0x75316420]
    %s68 = scalar_lea.vmem [#allocation1], 16
    %69 = vst [vmem:[%s68] ss:$2 sm:$0xff] %v38
    %v70 = vld.sshfl [vmem:[#allocation1 + $0x10] sm:$0xff pattern:$0x75316420]
    %v71 = vld.sshfl [vmem:[#allocation1 + $0x18] sm:$0xff pattern:$0x75316420]
    %v76 = vsel %vm52, %v66, -inf
    %v77 = vsel %vm52, %v67, -inf
    %v78 = vmax.f32 %v76, %v77
    %79 = vmax.xlane.f32.xlu0 %v78
    %v80 = vpop.xlane.xlu0 %79
    %v81 = vsel %vm52, %v70, -inf
    %v82 = vsel %vm52, %v71, -inf
    %v83 = vmax.f32 %v81, %v82
    %84 = vmax.xlane.f32.xlu0 %v83
    %v85 = vpop.xlane.xlu0 %84
    %v88 = vlaneseq
    %v89 = vand.u32 %v88, 127
    %v90 = vperm.slane %v63, %v89
    %v91 = vperm.slane %v64, %v89
    %vm92 = vcmask 1041409
    %v93 = vsel %vm92, %v91, %v90
    %v97 = vperm.slane %v80, %v89
    %v98 = vperm.slane %v85, %v89
    %vm99 = vcmask 1043459
    %v100 = vsel %vm99, %v98, %v97
    %vm102 = vcmask 1041408
    %v103 = vsel %vm102, %v93, %v100
    %v104 = vld [vmem:[%s1] sm:$0xf]
    %v105 = vld [vmem:[%s2] sm:$0x1]
    %v107 = vperm.slane %v105, 0
    %vm109 = vcmask 31744
    %v111 = vsel %vm109, %v103, 0
    %v114 = vsel %vm52, %v104, 0
    %116 = vmatpush.msra.mxu0 0.0
    %117 = vmatpush.msra.mxu0 0.0
    %118 = vmatpush.msra.mxu0 0.0
    %119 = vmatpush.msra.mxu0 0.0
    %120 = vmatpush.msra.mxu0 0.0
    %121 = vmatpush.msra.mxu0 0.0
    %122 = vmatpush.msra.mxu0 0.0
    %123 = vmatpush.msra.mxu0 0.0
    %124 = vmatpush.msra.mxu0 0.0
    %125 = vmatpush.msra.mxu0 0.0
    %126 = vmatpush.msra.mxu0 0.0
    %127 = vmatpush.msra.mxu0 0.0
    %128 = vmatpush.msra.mxu0 0.0
    %129 = vmatpush.msra.mxu0 0.0
    %130 = vmatpush.msra.mxu0 0.0
    %131 = vmatpush.msra.mxu0 %v114
    %132 = vmatmul.f32.gmra.mxu0 %v111
    %v133 = vpop.f32.mrf.mxu0
    %v134 = vadd.f32 %v107, %v133
    %135 = vdwg.mxu0
    %v136 = vmax.f32 %v134, 0.0
    %v137 = vld [vmem:[%s3] sm:$0xff]
    %v138 = vld [vmem:[%s4] sm:$0x1]
    %v140 = vperm.slane %v138, 0
    %vm142 = vcmask 64512
    %v144 = vsel %vm142, %v136, 0
    %146 = vmatpush.msra.mxu0 0.0
    %147 = vmatpush.msra.mxu0 0.0
    %148 = vmatpush.msra.mxu0 0.0
    %149 = vmatpush.msra.mxu0 0.0
    %150 = vmatpush.msra.mxu0 0.0
    %151 = vmatpush.msra.mxu0 0.0
    %152 = vmatpush.msra.mxu0 0.0
    %153 = vmatpush.msra.mxu0 0.0
    %154 = vmatpush.msra.mxu0 0.0
    %155 = vmatpush.msra.mxu0 0.0
    %156 = vmatpush.msra.mxu0 0.0
    %157 = vmatpush.msra.mxu0 0.0
    %158 = vmatpush.msra.mxu0 0.0
    %159 = vmatpush.msra.mxu0 0.0
    %160 = vmatpush.msra.mxu0 0.0
    %161 = vmatpush.msra.mxu0 %v137
    %162 = vmatmul.f32.gmra.mxu0 %v144
    %v163 = vpop.f32.mrf.mxu0
    %v164 = vadd.f32 %v140, %v163
    %165 = vdwg.mxu0
    %v167 = vrot.slane %v164, 2
    %v169 = vadd.f32 %v164, %v167
    %v170 = vxor.u32 %v169, 2147483648
    %v171 = vmul.f32 %v170, 1.442695
    %v172 = vpow.pop %v171
    %v173 = vadd.f32 %v172, 1.0
    %v174 = vrcp.pop %v173
    %v175 = vmul.f32 %v173, %v174
    %v176 = vsub.f32 1.0, %v175
    %v177 = vmul.f32 %v174, %v176
    %v178 = vadd.f32 %v174, %v177
    %vm179 = vweird.f32 %v173
    %vm180 = vweird.f32 %v174
    %vm181 = vmor %vm179, %vm180
    %v182 = vsel %vm181, %v174, %v178
    %v183 = vand.u32 2147483647, %v173
    %vm184 = vcmp.eq.f32.partialorder %v183, 8.507059e+37
    %v185 = vand.u32 %v173, 2147483648
    %v186 = vor.u32 1.1754944e-38, %v185
    %v187 = vsel %vm184, %v186, %v182
    %v188 = vmul.f32 1.0, %v187
    %v189 = vperm.slane %v188, 0
    %v190 = vlaneseq
    %v191 = vshrl.u32 %v190, 7
    %193 = vset.pattern.permute.xlu0 %v191
    %194 = vperm.xlu0 %193, %v189
    %v195 = vpop.permute.xlu0 %194
    %v196 = vperm.slane %v188, 1
    %v197 = vlaneseq
    %v198 = vshrl.u32 %v197, 7
    %200 = vset.pattern.permute.xlu0 %v198
    %201 = vperm.xlu0 %200, %v196
    %v202 = vpop.permute.xlu0 %201
    %v206 = vunpack.c.l.s4 839922192
    %v207 = vunpack.c.0.s8 %v206
    %v208 = vperm.slane %v195, %v207
    %v210 = vunpack.c.l.s4 839922192
    %v211 = vunpack.c.0.s8 %v210
    %v212 = vperm.slane %v202, %v211
    %v215 = vmul.f32 %v37, %v208
    %v216 = vmul.f32 %v38, %v212
    %217 = vst [vmem:[#allocation5] sm:$0xff] %v215
    %218 = vst [vmem:[#allocation5 + $0x8] sm:$0xff] %v216
    // Predicated region
    $region26: #{tpu_custom_call.1} parent=1 // pred_check
      _
    $region27: #{tpu_custom_call.1} parent=1 // pred_check_branch
      %220 = sbr.rel (0) target = $region29
    $region28: #{tpu_custom_call.1} parent=1 // pred_region
      %222 = vsyncadd [#allocation4], 0
      %s223 = sshll.u32 [#allocation5], 4
      %s224 = int_to_ptr.vmem [resolvable:$true] %s223
      %s225 = sshll.u32 %s5, 4
      %s226 = int_to_ptr.hbm [resolvable:$true] %s225
      %231 = dma.vmem_to_hbm [thread:$0]  %s224, 256, %s226, [#allocation4], 128, 128, 8
    $region29: #{tpu_custom_call.1} parent=1 // pred_fallthru
      _
    // Predicated region
    $region30: #{tpu_custom_call.1} parent=1 // pred_check
      _
    $region31: #{tpu_custom_call.1} parent=1 // pred_check_branch
      %233 = sbr.rel (0) target = $region33
    $region32: #{tpu_custom_call.1} parent=1 // pred_region
      %235 = dma.done [#allocation4], 256
    $region33: #{tpu_custom_call.1} parent=1 // pred_fallthru
      _
    %236 = vsyncpa [#allocation3], 1
    %237 = vsyncpa [#allocation4], 1

</llo_original>
